<compile_context>
chip_gen: v5e
topology: v5e:2x2
jax: 0.10.0
libtpu: 0.0.40
codegen_flags: <defaults>
</compile_context>

<pallas_src>
import functools
import math

import jax
import jax.numpy as jnp
from jax.experimental import pallas as pl
from jax.experimental.pallas import tpu as pltpu

LN_EPS = 1e-12


# ---------------------------------------------------------------- helpers ---
def _vmem_limit_bytes():
    """Per-generation VMEM budget: cap at 100 MiB, leave >=16 MiB headroom."""
    try:
        cap = int(pltpu.get_tpu_info().vmem_capacity_bytes)
    except Exception:
        cap = 128 * 1024 * 1024
    return int(max(32 << 20, min(100 << 20, cap - (16 << 20))))


VMEM_LIMIT = _vmem_limit_bytes()


def _layernorm(x, gamma, beta):
    """LayerNorm over the last (hidden) axis; gamma/beta are (1, H) f32."""
    mu = jnp.mean(x, axis=-1, keepdims=True)
    var = jnp.mean((x - mu) ** 2, axis=-1, keepdims=True)
    return (x - mu) * jax.lax.rsqrt(var + LN_EPS) * gamma + beta


def _gelu(x):
    # TODO(synk): HF BERT uses exact erf GELU; tanh approximation used because
    # erf lowering inside Mosaic is not guaranteed (per-element diff ~1e-3).
    c = math.sqrt(2.0 / math.pi)
    return 0.5 * x * (1.0 + jnp.tanh(c * (x + 0.044715 * x * x * x)))


def _row_tile(n, max_rows=512):
    """Largest token tile (<= max_rows) dividing n; multiples of 16 preferred
    for bf16 sublane packing, 8-row fallback."""
    for t in (512, 256, 128, 64, 32, 16, 8):
        if t <= max_rows and t <= n and n % t == 0:
            return t
    return n  # fall back: single full-height block (always legal)


def _ffn_chunk(inter, max_chunk=512):
    """Intermediate-dim chunk for the FFN loop (keeps GELU live tensor small)."""
    if inter <= max_chunk:
        return inter
    for c in (512, 384, 256, 128, 64):
        if inter % c == 0:
            return c
    return inter


def _cparams(*sem):
    return pltpu.CompilerParams(dimension_semantics=sem,
                                vmem_limit_bytes=VMEM_LIMIT)


# ---------------------------------------------------------------- kernels ---
def embed_ln_kernel(we_ref, pt_ref, g_ref, b_ref, o_ref):
    """Fused (word + pos + type) embedding sum + LayerNorm for one batch."""
    x = we_ref[...] + pt_ref[...]                        # (S, H) f32
    o_ref[...] = _layernorm(x, g_ref[...], b_ref[...]).astype(o_ref.dtype)


def qkv_proj_kernel(x_ref, w_ref, b_ref, o_ref):
    """Fused QKV projection for one token tile: (T,H) @ (H,3H) + (1,3H)."""
    x = x_ref[...].astype(jnp.bfloat16)                  # (T, H) bf16
    acc = jnp.dot(x, w_ref[...], preferred_element_type=jnp.float32)
    o_ref[...] = (acc + b_ref[...]).astype(o_ref.dtype)  # store bf16


def attention_kernel(qkv_ref, mb_ref, o_ref, *, num_heads, hidden):
    """Multi-head attention for one batch element.

    qkv block: (S, 3H) bf16 (scale folded into the Q weights), columns laid
    out as [Q | K | V]; mb block: (1, 1, S) f32 additive mask bias; output:
    lane-dense (S, H) bf16 context written straight into (B*S, H) layout.
    Heads are processed sequentially so only one (S, S) score tensor is live.
    """
    hd = hidden // num_heads
    mb = mb_ref[0]                                       # (1, S) f32
    ctx_heads = []
    for h in range(num_heads):                           # static unrolled loop
        q = qkv_ref[:, h * hd:(h + 1) * hd]              # (S, hd) bf16
        k = qkv_ref[:, hidden + h * hd:hidden + (h + 1) * hd]
        v = qkv_ref[:, 2 * hidden + h * hd:2 * hidden + (h + 1) * hd]
        s = jnp.einsum('qd,kd->qk', q, k,
                       preferred_element_type=jnp.float32)       # (S, S) f32
        s = s + mb                                        # broadcast over rows
        s = s - jnp.max(s, axis=-1, keepdims=True)
        p = jnp.exp(s)
        denom = jnp.sum(p, axis=-1, keepdims=True)
        p = p * pl.reciprocal(denom, approx=True)         # EUP, not VALU divide
        ctx_heads.append(jnp.einsum('qk,kd->qd', p.astype(jnp.bfloat16), v,
                                    preferred_element_type=jnp.float32))
    o_ref[...] = jnp.concatenate(ctx_heads, axis=-1).astype(o_ref.dtype)


def out_ffn_kernel(ctx_ref, x_ref, wo_ref, bo_ref, ln1g_ref, ln1b_ref,
                   w1_ref, b1_ref, w2_ref, b2_ref, ln2g_ref, ln2b_ref, o_ref,
                   *, ffn_chunk):
    """Attention out-proj + Add&LN + chunked FFN(GELU) + Add&LN for one tile."""
    attn_out = jnp.dot(ctx_ref[...].astype(jnp.bfloat16), wo_ref[...],
                       preferred_element_type=jnp.float32) + bo_ref[...]
    h1 = _layernorm(x_ref[...].astype(jnp.float32) + attn_out,
                    ln1g_ref[...], ln1b_ref[...])
    h1b = h1.astype(jnp.bfloat16)

    inter = w1_ref.shape[1]
    acc = None
    for c0 in range(0, inter, ffn_chunk):                # static chunk loop
        c1 = min(c0 + ffn_chunk, inter)
        ff = jnp.dot(h1b, w1_ref[:, c0:c1],
                     preferred_element_type=jnp.float32) + b1_ref[:, c0:c1]
        ff = _gelu(ff)
        part = jnp.dot(ff.astype(jnp.bfloat16), w2_ref[c0:c1, :],
                       preferred_element_type=jnp.float32)
        acc = part if acc is None else acc + part
    ff_out = acc + b2_ref[...]
    o_ref[...] = _layernorm(h1 + ff_out, ln2g_ref[...],
                            ln2b_ref[...]).astype(o_ref.dtype)


# --------------------------------------------------------------- wrappers ---
def _embed_layernorm(word, pos_type, gamma, beta, B, S, H):
    return pl.pallas_call(
        embed_ln_kernel,
        out_shape=jax.ShapeDtypeStruct((B * S, H), jnp.bfloat16),
        grid=(B,),
        in_specs=[pl.BlockSpec((S, H), lambda b: (b, 0)),
                  pl.BlockSpec((S, H), lambda b: (0, 0)),
                  pl.BlockSpec((1, H), lambda b: (0, 0)),
                  pl.BlockSpec((1, H), lambda b: (0, 0))],
        out_specs=pl.BlockSpec((S, H), lambda b: (b, 0)),
        compiler_params=_cparams("parallel"),
    )(word, pos_type, gamma, beta)


def _bert_layer(h, mask_bias, lp, num_heads, B, S, out_dtype):
    N, H = h.shape
    I = lp['w1'].shape[1]
    T = _row_tile(N)

    # 1) fused QKV projection, token-tiled, weight VMEM-resident across tiles.
    qkv = pl.pallas_call(
        qkv_proj_kernel,
        out_shape=jax.ShapeDtypeStruct((N, 3 * H), jnp.bfloat16),
        grid=(N // T,),
        in_specs=[pl.BlockSpec((T, H), lambda i: (i, 0)),
                  pl.BlockSpec((H, 3 * H), lambda i: (0, 0)),
                  pl.BlockSpec((1, 3 * H), lambda i: (0, 0))],
        out_specs=pl.BlockSpec((T, 3 * H), lambda i: (i, 0)),
        compiler_params=_cparams("parallel"),
    )(h, lp['w_qkv'], lp['b_qkv'])

    # 2) attention: per-batch grid, in-kernel sequential head loop; reads the
    #    flat (S, 3H) QKV block and writes a lane-dense (S, H) context block
    #    directly in (B*S, H) layout -> no XLA transposes around this kernel.
    ctx = pl.pallas_call(
        functools.partial(attention_kernel, num_heads=num_heads, hidden=H),
        out_shape=jax.ShapeDtypeStruct((N, H), jnp.bfloat16),
        grid=(B,),
        in_specs=[pl.BlockSpec((S, 3 * H), lambda b: (b, 0)),
                  pl.BlockSpec((1, 1, S), lambda b: (b, 0, 0))],
        out_specs=pl.BlockSpec((S, H), lambda b: (b, 0)),
        compiler_params=_cparams("parallel"),
    )(qkv, mask_bias)

    # 3) out-proj + Add&LN + chunked FFN + Add&LN, token-tiled, weights resident.
    return pl.pallas_call(
        functools.partial(out_ffn_kernel, ffn_chunk=_ffn_chunk(I)),
        out_shape=jax.ShapeDtypeStruct((N, H), out_dtype),
        grid=(N // T,),
        in_specs=[pl.BlockSpec((T, H), lambda i: (i, 0)),   # ctx (bf16)
                  pl.BlockSpec((T, H), lambda i: (i, 0)),   # residual (bf16)
                  pl.BlockSpec((H, H), lambda i: (0, 0)),   # wo
                  pl.BlockSpec((1, H), lambda i: (0, 0)),   # bo
                  pl.BlockSpec((1, H), lambda i: (0, 0)),   # ln1 gamma
                  pl.BlockSpec((1, H), lambda i: (0, 0)),   # ln1 beta
                  pl.BlockSpec((H, I), lambda i: (0, 0)),   # w1
                  pl.BlockSpec((1, I), lambda i: (0, 0)),   # b1
                  pl.BlockSpec((I, H), lambda i: (0, 0)),   # w2
                  pl.BlockSpec((1, H), lambda i: (0, 0)),   # b2
                  pl.BlockSpec((1, H), lambda i: (0, 0)),   # ln2 gamma
                  pl.BlockSpec((1, H), lambda i: (0, 0))],  # ln2 beta
        out_specs=pl.BlockSpec((T, H), lambda i: (i, 0)),
        compiler_params=_cparams("parallel"),
    )(ctx, h, lp['wo'], lp['bo'], lp['ln1_g'], lp['ln1_b'],
      lp['w1'], lp['b1'], lp['w2'], lp['b2'], lp['ln2_g'], lp['ln2_b'])


def bert_encoder_forward(params, ids, mask=None):
    """Equivalent of BertModel(ids, attention_mask=mask)[-1][-2]."""
    B, S = ids.shape
    H = params['hidden']
    num_heads = params['num_heads']

    if mask is None:
        mask = jnp.ones((B, S), jnp.float32)
    mask_bias = ((1.0 - mask.astype(jnp.float32)) * -10000.0).reshape(B, 1, S)

    # Embeddings: gather is XLA glue; sum + LayerNorm fused in one kernel.
    word = jnp.take(params['word_emb'], ids.reshape(-1), axis=0)       # (B*S,H)
    pos_type = params['pos_emb'][:S] + params['type_emb'][0][None, :]  # (S, H)
    h = _embed_layernorm(word, pos_type, params['emb_ln_g'],
                         params['emb_ln_b'], B, S, H)

    # hidden_states[-2] == output of layer L-1, so the last layer is skipped.
    layers = params['layers'][:-1]
    for li, lp in enumerate(layers):
        out_dtype = jnp.float32 if li == len(layers) - 1 else jnp.bfloat16
        h = _bert_layer(h, mask_bias, lp, num_heads, B, S, out_dtype)

    if h.dtype != jnp.float32:
        h = h.astype(jnp.float32)
    return h.reshape(B, S, H)


# ------------------------------------------------------------------ init ----
def init_params(key, *, vocab, max_pos, type_vocab, hidden, intermediate,
                num_layers, num_heads):
    std = 0.02
    ks = iter(jax.random.split(key, 8 + 16 * num_layers))

    def nrm(shape):
        return std * jax.random.normal(next(ks), shape, jnp.float32)

    params = {
        'num_heads': num_heads,
        'hidden': hidden,
        'word_emb': nrm((vocab, hidden)),
        'pos_emb': nrm((max_pos, hidden)),
        'type_emb': nrm((type_vocab, hidden)),
        'emb_ln_g': jnp.ones((1, hidden), jnp.float32),
        'emb_ln_b': jnp.zeros((1, hidden), jnp.float32),
        'layers': [],
    }
    for _ in range(num_layers):
        params['layers'].append({
            'wq': nrm((hidden, hidden)), 'bq': jnp.zeros((1, hidden), jnp.float32),
            'wk': nrm((hidden, hidden)), 'bk': jnp.zeros((1, hidden), jnp.float32),
            'wv': nrm((hidden, hidden)), 'bv': jnp.zeros((1, hidden), jnp.float32),
            'wo': nrm((hidden, hidden)), 'bo': jnp.zeros((1, hidden), jnp.float32),
            'ln1_g': jnp.ones((1, hidden), jnp.float32),
            'ln1_b': jnp.zeros((1, hidden), jnp.float32),
            'w1': nrm((hidden, intermediate)),
            'b1': jnp.zeros((1, intermediate), jnp.float32),
            'w2': nrm((intermediate, hidden)),
            'b2': jnp.zeros((1, hidden), jnp.float32),
            'ln2_g': jnp.ones((1, hidden), jnp.float32),
            'ln2_b': jnp.zeros((1, hidden), jnp.float32),
        })
    return params


def prepare_params(params):
    """Fuse QKV weights, fold 1/sqrt(hd) into Q, cast matmul weights to bf16.

    Biases and LayerNorm parameters stay f32 (added after f32 accumulation).
    """
    H = params['hidden']
    hd = H // params['num_heads']
    scale = 1.0 / math.sqrt(hd)
    prepped = {k: v for k, v in params.items() if k != 'layers'}
    prepped['layers'] = []
    for lp in params['layers']:
        prepped['layers'].append({
            'w_qkv': jnp.concatenate(
                [lp['wq'] * scale, lp['wk'], lp['wv']], axis=1
            ).astype(jnp.bfloat16),
            'b_qkv': jnp.concatenate([lp['bq'] * scale, lp['bk'], lp['bv']],
                                     axis=1),
            'wo': lp['wo'].astype(jnp.bfloat16), 'bo': lp['bo'],
            'ln1_g': lp['ln1_g'], 'ln1_b': lp['ln1_b'],
            'w1': lp['w1'].astype(jnp.bfloat16), 'b1': lp['b1'],
            'w2': lp['w2'].astype(jnp.bfloat16), 'b2': lp['b2'],
            'ln2_g': lp['ln2_g'], 'ln2_b': lp['ln2_b'],
        })
    return prepped


# ------------------------------------------------------------------ main ----
if __name__ == "__main__":
    # Small BERT config: B=2, S=8, H=32, heads=4, intermediate=64, layers=2.
    B, S, H = 2, 8, 32
    NUM_HEADS, INTER, LAYERS = 4, 64, 2
    VOCAB, MAX_POS, TYPE_VOCAB = 100, 16, 2

    root = jax.random.PRNGKey(0)
    k_param, k_ids = jax.random.split(root)

    raw_params = init_params(k_param, vocab=VOCAB, max_pos=MAX_POS,
                             type_vocab=TYPE_VOCAB, hidden=H,
                             intermediate=INTER, num_layers=LAYERS,
                             num_heads=NUM_HEADS)
    params = prepare_params(raw_params)

    ids = jax.random.randint(k_ids, (B, S), 0, VOCAB, dtype=jnp.int32)
    mask = jnp.ones((B, S), jnp.float32)

    out = bert_encoder_forward(params, ids, mask)
    out = jax.block_until_ready(out)

    assert out.shape == (B, S, H) and out.dtype == jnp.float32
    print("KERNEL_OK")
</pallas_src>

<mosaic_0001>
module attributes {stable_mosaic.version = 11 : i64} {
  func.func @embed_ln_kernel(%arg0: i32, %arg1: memref<8x32xf32, #tpu.memory_space<vmem>>, %arg2: memref<8x32xf32, #tpu.memory_space<vmem>>, %arg3: memref<1x32xf32, #tpu.memory_space<vmem>>, %arg4: memref<1x32xf32, #tpu.memory_space<vmem>>, %arg5: memref<8x32xbf16, #tpu.memory_space<vmem>>) attributes {dimension_semantics = [#tpu.dimension_semantics<parallel>], iteration_bounds = array<i64: 2>, scalar_prefetch = 0 : i64, scratch_operands = 0 : i64, tpu.core_type = #tpu.core_type<tc>, window_params = [{transform_indices = @transform_0, window_bounds = array<i64: 8, 32>}, {pipeline_mode = #tpu.pipeline_mode<synchronous>, transform_indices = @transform_1, window_bounds = array<i64: 8, 32>}, {pipeline_mode = #tpu.pipeline_mode<synchronous>, transform_indices = @transform_2, window_bounds = array<i64: 1, 32>}, {pipeline_mode = #tpu.pipeline_mode<synchronous>, transform_indices = @transform_3, window_bounds = array<i64: 1, 32>}, {transform_indices = @transform_4, window_bounds = array<i64: 8, 32>}]} {
    %c0 = arith.constant 0 : index
    %c0_0 = arith.constant 0 : index
    %0 = vector.load %arg1[%c0, %c0_0] : memref<8x32xf32, #tpu.memory_space<vmem>>, vector<8x32xf32>
    %c0_1 = arith.constant 0 : index
    %c0_2 = arith.constant 0 : index
    %1 = vector.load %arg2[%c0_1, %c0_2] : memref<8x32xf32, #tpu.memory_space<vmem>>, vector<8x32xf32>
    %2 = arith.addf %0, %1 : vector<8x32xf32>
    %c0_3 = arith.constant 0 : index
    %c0_4 = arith.constant 0 : index
    %3 = vector.load %arg3[%c0_3, %c0_4] : memref<1x32xf32, #tpu.memory_space<vmem>>, vector<1x32xf32>
    %c0_5 = arith.constant 0 : index
    %c0_6 = arith.constant 0 : index
    %4 = vector.load %arg4[%c0_5, %c0_6] : memref<1x32xf32, #tpu.memory_space<vmem>>, vector<1x32xf32>
    %cst = arith.constant dense<0.000000e+00> : vector<8xf32>
    %5 = vector.multi_reduction <add>, %2, %cst [1] : vector<8x32xf32> to vector<8xf32>
    %6 = vector.shape_cast %5 : vector<8xf32> to vector<8x1xf32>
    %cst_7 = arith.constant 3.200000e+01 : f32
    %7 = vector.broadcast %cst_7 : f32 to vector<8x1xf32>
    %8 = arith.divf %6, %7 : vector<8x1xf32>
    %9 = vector.broadcast %8 : vector<8x1xf32> to vector<8x32xf32>
    %10 = arith.subf %2, %9 : vector<8x32xf32>
    %11 = arith.mulf %10, %10 : vector<8x32xf32>
    %cst_8 = arith.constant dense<0.000000e+00> : vector<8xf32>
    %12 = vector.multi_reduction <add>, %11, %cst_8 [1] : vector<8x32xf32> to vector<8xf32>
    %13 = vector.shape_cast %12 : vector<8xf32> to vector<8x1xf32>
    %cst_9 = arith.constant 3.200000e+01 : f32
    %14 = vector.broadcast %cst_9 : f32 to vector<8x1xf32>
    %15 = arith.divf %13, %14 : vector<8x1xf32>
    %16 = vector.broadcast %8 : vector<8x1xf32> to vector<8x32xf32>
    %17 = arith.subf %2, %16 : vector<8x32xf32>
    %cst_10 = arith.constant 9.99999996E-13 : f32
    %18 = vector.broadcast %cst_10 : f32 to vector<8x1xf32>
    %19 = arith.addf %15, %18 : vector<8x1xf32>
    %20 = math.rsqrt %19 : vector<8x1xf32>
    %21 = vector.broadcast %20 : vector<8x1xf32> to vector<8x32xf32>
    %22 = arith.mulf %17, %21 : vector<8x32xf32>
    %23 = vector.broadcast %3 : vector<1x32xf32> to vector<8x32xf32>
    %24 = arith.mulf %22, %23 : vector<8x32xf32>
    %25 = vector.broadcast %4 : vector<1x32xf32> to vector<8x32xf32>
    %26 = arith.addf %24, %25 : vector<8x32xf32>
    %27 = arith.truncf %26 : vector<8x32xf32> to vector<8x32xbf16>
    %c0_11 = arith.constant 0 : index
    %c0_12 = arith.constant 0 : index
    %28 = vector.load %arg5[%c0_11, %c0_12] : memref<8x32xbf16, #tpu.memory_space<vmem>>, vector<8x32xbf16>
    tpu.vector_store %arg5[%c0_11, %c0_12], %27 {strides = array<i32>} : memref<8x32xbf16, #tpu.memory_space<vmem>>, vector<8x32xbf16>,
    return
  }
  func.func @transform_0(%arg0: i32) -> (i32, i32) {
    %c0_i32 = arith.constant 0 : i32
    %c0_i32_0 = arith.constant 0 : i32
    return %arg0, %c0_i32 : i32, i32
  }
  func.func @transform_1(%arg0: i32) -> (i32, i32) {
    %c0_i32 = arith.constant 0 : i32
    %c0_i32_0 = arith.constant 0 : i32
    %c0_i32_1 = arith.constant 0 : i32
    return %c0_i32, %c0_i32_0 : i32, i32
  }
  func.func @transform_2(%arg0: i32) -> (i32, i32) {
    %c0_i32 = arith.constant 0 : i32
    %c0_i32_0 = arith.constant 0 : i32
    %c0_i32_1 = arith.constant 0 : i32
    return %c0_i32, %c0_i32_0 : i32, i32
  }
  func.func @transform_3(%arg0: i32) -> (i32, i32) {
    %c0_i32 = arith.constant 0 : i32
    %c0_i32_0 = arith.constant 0 : i32
    %c0_i32_1 = arith.constant 0 : i32
    return %c0_i32, %c0_i32_0 : i32, i32
  }
  func.func @transform_4(%arg0: i32) -> (i32, i32) {
    %c0_i32 = arith.constant 0 : i32
    %c0_i32_0 = arith.constant 0 : i32
    return %arg0, %c0_i32 : i32, i32
  }
}

</mosaic_0001>

<llo_original>
// kernel: tpu_custom_call.1
$region0: #{tpu_custom_call.1}
  #allocation0 [shape = 'u32[]', space=smem, size = 0x4, offset = 0x4, fixed_abs, tag = 'smem constant byte address 0x4 - core index']
  #allocation1 [shape = 'u32[72,128]{1,0:T(1,128)}', space=vmem, size = 0x9000, scoped, tag = 'internal scratch']
  %s0 = inlined_call_operand.hbm [shape: f32[16,32], index: 0, kind: input, shape index: {}]
  %s1 = inlined_call_operand.hbm [shape: f32[8,32], index: 1, kind: input, shape index: {}]
  %s2 = inlined_call_operand.vmem [shape: f32[1,32], index: 2, kind: input, shape index: {}]
  %s3 = inlined_call_operand.vmem [shape: f32[1,32], index: 3, kind: input, shape index: {}]
  %s4 = inlined_call_operand.hbm [shape: bf16[16,32], index: 4, kind: output, shape index: {}]
  %s5 = sld [smem:[#allocation0]]
  $region57: #{tpu_custom_call.1} parent=0
    _
  %s7 = ssub.s32 1, %s5
  %s8 = scalar_select 0, %s7, %s5
  $region1: #{tpu_custom_call.1} parent=0
    #allocation2 [shape = 'u8[8192]{0}', space=vmem, size = 0x2000, scoped, tag = 'input window, operand 0']
    #allocation3 [shape = 's32[2]{0}', space=sflag, size = 0x8, scoped, tag = 'scoped memory for tpu_custom_call.1']
    #allocation4 [shape = 's32[2]{0}', space=sflag, size = 0x8, scoped, tag = 'scoped memory for tpu_custom_call.1']
    #allocation5 [shape = 'u8[4096]{0}', space=vmem, size = 0x1000, scoped, tag = 'input window, operand 1, single buffered']
    #allocation6 [shape = 's32[1]{0}', space=sflag, size = 0x4, scoped, tag = 'scoped memory for tpu_custom_call.1']
    #allocation7 [shape = 'u8[4096]{0}', space=vmem, size = 0x1000, scoped, tag = 'output window, operand 0']
    %9 = vsyncpa [#allocation3], 0
    %s10 = scalar_lea.sflag [#allocation3], 1
    %11 = vsyncpa %s10, 0
    %12 = vsyncpa [#allocation6], 0
    %13 = vsyncpa [#allocation4], 0
    %s14 = scalar_lea.sflag [#allocation4], 1
    %15 = vsyncpa %s14, 0
    loop: start=0, step=1, limit=4
    $region2: #{tpu_custom_call.1} parent=1 // loop_pre_header
      _
    $region3: #{tpu_custom_call.1} parent=1 // loop_header
      %s17 = sphi 0, %s21
      %p18 = scmp.ge.s32.totalorder %s17, 4
      %s27 = sphi 0, %s29
      %s30 = sphi 0, %s27
      %s31 = sphi 0, %s30
      %s47 = sphi 0, %s31
      %s51 = sphi 0, %s51
      %s53 = sphi 0, %s51
      %s54 = sphi 0, %s53
      %s68 = sphi 0, %s54
      %s72 = sphi 0, %s72
      %s74 = sphi 0, %s72
      %s75 = sphi 0, %s74
      %s89 = sphi 0, %s75
      %s93 = sphi 0, %s93
      %s95 = sphi 0, %s93
      %s96 = sphi 0, %s95
      %s110 = sphi 0, %s96
      %s116 = sphi 0, %s118
      %s119 = sphi 0, %s116
      %s120 = sphi 0, %s119
      %s136 = sphi 0, %s120
    $region4: #{tpu_custom_call.1} parent=1 // loop_header_branch
      %20 = sbr.rel (%p18) target = $region8
    $region5: #{tpu_custom_call.1} parent=1 // loop_body
      %s22 = ssub.s32 %s17, 1
      %s23 = ssub.s32 %s17, 2
      %s24 = sadd.s32 %s17, 1
      %s25 = ssub.s32 %s17, %s24
      %p26 = scmp.eq.s32.totalorder %s25, 0
      %s28 = sadd.s32 %s27, 1
      %s29 = scalar_select %p26, %s27, %s28
      %p32 = pneg %p26
      %p33 = scmp.eq.s32.totalorder %s17, 1
      %p34 = por %p32, %p33
      %p35 = scmp.ne.s32.totalorder %s27, %s30
      %p36 = scmp.eq.s32.totalorder %s17, 0
      %p37 = por %p35, %p36
      %p38 = scmp.ne.s32.totalorder %s27, %s30
      %p39 = scmp.eq.s32.totalorder %s22, 1
      %p40 = por %p38, %p39
      %p41 = scmp.ne.s32.totalorder %s30, %s31
      %p42 = scmp.eq.s32.totalorder %s22, 0
      %p43 = por %p41, %p42
      %p44 = scmp.ne.s32.totalorder %s30, %s31
      %p45 = scmp.eq.s32.totalorder %s23, 1
      %p46 = por %p44, %p45
      %p48 = scmp.ne.s32.totalorder %s31, %s47
      %p49 = scmp.eq.s32.totalorder %s23, 0
      %p50 = por %p48, %p49
      %s52 = sadd.s32 %s51, 1
      %p55 = scmp.eq.s32.totalorder %s17, 1
      %p56 = scmp.ne.s32.totalorder %s51, %s53
      %p57 = scmp.eq.s32.totalorder %s17, 0
      %p58 = por %p56, %p57
      %p59 = scmp.ne.s32.totalorder %s51, %s53
      %p60 = scmp.eq.s32.totalorder %s22, 1
      %p61 = por %p59, %p60
      %p62 = scmp.ne.s32.totalorder %s53, %s54
      %p63 = scmp.eq.s32.totalorder %s22, 0
      %p64 = por %p62, %p63
      %p65 = scmp.ne.s32.totalorder %s53, %s54
      %p66 = scmp.eq.s32.totalorder %s23, 1
      %p67 = por %p65, %p66
      %p69 = scmp.ne.s32.totalorder %s54, %s68
      %p70 = scmp.eq.s32.totalorder %s23, 0
      %p71 = por %p69, %p70
      %s73 = sadd.s32 %s72, 1
      %p76 = scmp.eq.s32.totalorder %s17, 1
      %p77 = scmp.ne.s32.totalorder %s72, %s74
      %p78 = scmp.eq.s32.totalorder %s17, 0
      %p79 = por %p77, %p78
      %p80 = scmp.ne.s32.totalorder %s72, %s74
      %p81 = scmp.eq.s32.totalorder %s22, 1
      %p82 = por %p80, %p81
      %p83 = scmp.ne.s32.totalorder %s74, %s75
      %p84 = scmp.eq.s32.totalorder %s22, 0
      %p85 = por %p83, %p84
      %p86 = scmp.ne.s32.totalorder %s74, %s75
      %p87 = scmp.eq.s32.totalorder %s23, 1
      %p88 = por %p86, %p87
      %p90 = scmp.ne.s32.totalorder %s75, %s89
      %p91 = scmp.eq.s32.totalorder %s23, 0
      %p92 = por %p90, %p91
      %s94 = sadd.s32 %s93, 1
      %p97 = scmp.eq.s32.totalorder %s17, 1
      %p98 = scmp.ne.s32.totalorder %s93, %s95
      %p99 = scmp.eq.s32.totalorder %s17, 0
      %p100 = por %p98, %p99
      %p101 = scmp.ne.s32.totalorder %s93, %s95
      %p102 = scmp.eq.s32.totalorder %s22, 1
      %p103 = por %p101, %p102
      %p104 = scmp.ne.s32.totalorder %s95, %s96
      %p105 = scmp.eq.s32.totalorder %s22, 0
      %p106 = por %p104, %p105
      %p107 = scmp.ne.s32.totalorder %s95, %s96
      %p108 = scmp.eq.s32.totalorder %s23, 1
      %p109 = por %p107, %p108
      %p111 = scmp.ne.s32.totalorder %s96, %s110
      %p112 = scmp.eq.s32.totalorder %s23, 0
      %p113 = por %p111, %p112
      %s114 = ssub.s32 %s17, %s24
      %p115 = scmp.eq.s32.totalorder %s114, 0
      %s117 = sadd.s32 %s116, 1
      %s118 = scalar_select %p115, %s116, %s117
      %p121 = pneg %p115
      %p122 = scmp.eq.s32.totalorder %s17, 1
      %p123 = por %p121, %p122
      %p124 = scmp.ne.s32.totalorder %s116, %s119
      %p125 = scmp.eq.s32.totalorder %s17, 0
      %p126 = por %p124, %p125
      %p127 = scmp.ne.s32.totalorder %s116, %s119
      %p128 = scmp.eq.s32.totalorder %s22, 1
      %p129 = por %p127, %p128
      %p130 = scmp.ne.s32.totalorder %s119, %s120
      %p131 = scmp.eq.s32.totalorder %s22, 0
      %p132 = por %p130, %p131
      %p133 = scmp.ne.s32.totalorder %s119, %s120
      %p134 = scmp.eq.s32.totalorder %s23, 1
      %p135 = por %p133, %p134
      %p137 = scmp.ne.s32.totalorder %s120, %s136
      %p138 = scmp.eq.s32.totalorder %s23, 0
      %p139 = por %p137, %p138
      %p140 = scmp.le.s32.totalorder 1, %s17
      %p141 = scmp.lt.s32.totalorder %s17, 3
      %p142 = pnand %p140, %p141
      %p143 = pneg %p142
      // Predicated region
      $region9: #{tpu_custom_call.1} parent=5 // pred_check
        _
      $region10: #{tpu_custom_call.1} parent=5 // pred_check_branch
        %145 = sbr.rel (%p142) target = $region12
      $region11: #{tpu_custom_call.1} parent=5 // pred_region
        %s146 = ssub.s32 %s17, 1
        // Predicated region
        $region13: #{tpu_custom_call.1} parent=11 // pred_check
          %p147 = pneg %p64
        $region14: #{tpu_custom_call.1} parent=11 // pred_check_branch
          %149 = sbr.rel (%p147) target = $region16
        $region15: #{tpu_custom_call.1} parent=11 // pred_region
          %151 = vsyncadd [#allocation6], 0
          %s153 = sshll.u32 %s1, 4
          %s154 = int_to_ptr.hbm [resolvable:$true] %s153
          %s155 = sshll.u32 [#allocation5], 4
          %s156 = int_to_ptr.vmem [resolvable:$true] %s155
          %158 = dma.hbm_to_vmem [thread:$0]  %s154, 128, %s156, [#allocation6]
        $region16: #{tpu_custom_call.1} parent=11 // pred_fallthru
          _
        // Predicated region
        $region17: #{tpu_custom_call.1} parent=11 // pred_check
          %p159 = pneg %p85
        $region18: #{tpu_custom_call.1} parent=11 // pred_check_branch
          %161 = sbr.rel (%p159) target = $region20
        $region19: #{tpu_custom_call.1} parent=11 // pred_region
          _
        $region20: #{tpu_custom_call.1} parent=11 // pred_fallthru
          _
        // Predicated region
        $region21: #{tpu_custom_call.1} parent=11 // pred_check
          %p162 = pneg %p106
        $region22: #{tpu_custom_call.1} parent=11 // pred_check_branch
          %164 = sbr.rel (%p162) target = $region24
        $region23: #{tpu_custom_call.1} parent=11 // pred_region
          _
        $region24: #{tpu_custom_call.1} parent=11 // pred_fallthru
          _
      $region12: #{tpu_custom_call.1} parent=5 // pred_fallthru
        _
      %p165 = scmp.lt.s32.totalorder %s17, 2
      // Predicated region
      $region25: #{tpu_custom_call.1} parent=5 // pred_check
        %p166 = pneg %p165
      $region26: #{tpu_custom_call.1} parent=5 // pred_check_branch
        %168 = sbr.rel (%p166) target = $region28
      $region27: #{tpu_custom_call.1} parent=5 // pred_region
        // Predicated region
        $region29: #{tpu_custom_call.1} parent=27 // pred_check
          %p169 = pneg %p37
        $region30: #{tpu_custom_call.1} parent=27 // pred_check_branch
          %171 = sbr.rel (%p169) target = $region32
        $region31: #{tpu_custom_call.1} parent=27 // pred_region
          %s172 = sand.u32 %s27, 1
          %s173 = scalar_lea.sflag [#allocation3], %s172
          %s174 = sand.u32 %s27, 1
          %s175 = smul.addr %s174, 8
          %s176 = scalar_lea.vmem [#allocation2], %s175
          %178 = vsyncadd %s173, 0
          %s179 = smul.addr %s17, 8
          %s180 = scalar_lea.hbm %s0, %s179
          %s182 = sshll.u32 %s180, 4
          %s183 = int_to_ptr.hbm [resolvable:$true] %s182
          %s184 = sshll.u32 %s176, 4
          %s185 = int_to_ptr.vmem [resolvable:$true] %s184
          %187 = dma.hbm_to_vmem [thread:$0]  %s183, 128, %s185, %s173
        $region32: #{tpu_custom_call.1} parent=27 // pred_fallthru
          _
      $region28: #{tpu_custom_call.1} parent=5 // pred_fallthru
        _
      %p188 = scmp.le.s32.totalorder 1, %s17
      %p189 = scmp.lt.s32.totalorder %s17, 3
      %p190 = pnand %p188, %p189
      %p191 = pneg %p190
      // Predicated region
      $region33: #{tpu_custom_call.1} parent=5 // pred_check
        _
      $region34: #{tpu_custom_call.1} parent=5 // pred_check_branch
        %193 = sbr.rel (%p190) target = $region36
      $region35: #{tpu_custom_call.1} parent=5 // pred_region
        %s194 = ssub.s32 %s17, 1
        %s195 = sand.u32 %s30, 1
        %s196 = scalar_lea.sflag [#allocation3], %s195
        %s197 = sand.u32 %s30, 1
        %s198 = smul.addr %s197, 8
        %s199 = scalar_lea.vmem [#allocation2], %s198
        // Predicated region
        $region37: #{tpu_custom_call.1} parent=35 // pred_check
          %p200 = pneg %p43
        $region38: #{tpu_custom_call.1} parent=35 // pred_check_branch
          %202 = sbr.rel (%p200) target = $region40
        $region39: #{tpu_custom_call.1} parent=35 // pred_region
          %204 = dma.done %s196, 128
        $region40: #{tpu_custom_call.1} parent=35 // pred_fallthru
          _
        // Predicated region
        $region41: #{tpu_custom_call.1} parent=35 // pred_check
          %p205 = pneg %p64
        $region42: #{tpu_custom_call.1} parent=35 // pred_check_branch
          %207 = sbr.rel (%p205) target = $region44
        $region43: #{tpu_custom_call.1} parent=35 // pred_region
          %209 = dma.done [#allocation6], 128
        $region44: #{tpu_custom_call.1} parent=35 // pred_fallthru
          _
        %s210 = sand.u32 %s30, 1
        %s211 = scalar_lea.sflag [#allocation3], %s210
        %s212 = sand.u32 %s30, 1
        %s213 = smul.addr %s212, 8
        %s214 = scalar_lea.vmem [#allocation2], %s213
        %p215 = pneg %p43
        %p216 = pneg %p40
        %p217 = pneg %p64
        %p218 = pneg %p61
        %p219 = pneg %p85
        %p220 = pneg %p82
        %p221 = pneg %p106
        %p222 = pneg %p103
        %p223 = pneg %p132
        %p224 = pneg %p129
        %s225 = sand.u32 %s119, 1
        %s226 = scalar_lea.sflag [#allocation4], %s225
        %s227 = sand.u32 %s119, 1
        %s228 = smul.addr %s227, 4
        %s229 = scalar_lea.vmem [#allocation7], %s228
        %v230 = vld [vmem:[%s199] sm:$0xff]
        %v231 = vld [vmem:[#allocation5] sm:$0xff]
        %v232 = vadd.f32 %v230, %v231
        %v233 = vld [vmem:[%s2] sm:$0x1]
        %v234 = vld [vmem:[%s3] sm:$0x1]
        %vm235 = vcmask 261120
        %v236 = vsel %vm235, %v232, 0.0
        %237 = vadd.xlane.f32.xlu0 %v236
        %v238 = vpop.xlane.xlu0 %237
        %v239 = vrcp.pop 32.0
        %v240 = vmul.f32 32.0, %v239
        %v241 = vsub.f32 1.0, %v240
        %v242 = vmul.f32 %v239, %v241
        %v243 = vadd.f32 %v239, %v242
        %vm244 = vweird.f32 %v239
        %v245 = vsel %vm244, %v239, %v243
        %v246 = vmul.f32 %v238, %v245
        %v247 = vsub.f32 %v232, %v246
        %v248 = vmul.f32 %v247, %v247
        %v249 = vsel %vm235, %v248, 0.0
        %250 = vadd.xlane.f32.xlu0 %v249
        %v251 = vpop.xlane.xlu0 %250
        %v252 = vmul.f32 %v251, %v245
        %v253 = vadd.f32 %v252, 1e-12
        %v254 = vrsqrt.pop %v253
        %v255 = vmul.f32 %v254, %v253
        %v256 = vmul.f32 %v255, %v254
        %v257 = vmul.f32 0.5, %v256
        %v258 = vsub.f32 1.5, %v257
        %v259 = vmul.f32 %v254, %v258
        %vm260 = vweird.f32 %v253
        %vm261 = vweird.f32 %v254
        %vm262 = vmor %vm260, %vm261
        %v263 = vsel %vm262, %v254, %v259
        %v264 = vmul.f32 %v247, %v263
        %v266 = vperm.slane %v233, 0
        %v268 = vmul.f32 %v264, %v266
        %v270 = vperm.slane %v234, 0
        %v272 = vadd.f32 %v268, %v270
        %v273 = vpack.c.bf16 %v272, %v272
        %vm274 = vcmask 257024
        %275 = vst.msk [vmem:[%s229] sm:$0xf] %vm274, %v273
        %s276 = sand.u32 %s119, 1
        %s277 = scalar_lea.sflag [#allocation4], %s276
        %s278 = sand.u32 %s119, 1
        %s279 = smul.addr %s278, 4
        %s280 = scalar_lea.vmem [#allocation7], %s279
        // Predicated region
        $region45: #{tpu_custom_call.1} parent=35 // pred_check
          %p281 = pneg %p129
        $region46: #{tpu_custom_call.1} parent=35 // pred_check_branch
          %283 = sbr.rel (%p281) target = $region48
        $region47: #{tpu_custom_call.1} parent=35 // pred_region
          %285 = vsyncadd %s277, 0
          %s286 = smul.addr %s22, 4
          %s287 = scalar_lea.hbm %s4, %s286
          %s289 = sshll.u32 %s280, 4
          %s290 = int_to_ptr.vmem [resolvable:$true] %s289
          %s291 = sshll.u32 %s287, 4
          %s292 = int_to_ptr.hbm [resolvable:$true] %s291
          %294 = dma.vmem_to_hbm [thread:$0]  %s290, 64, %s292, %s277
        $region48: #{tpu_custom_call.1} parent=35 // pred_fallthru
          _
      $region36: #{tpu_custom_call.1} parent=5 // pred_fallthru
        _
      %p295 = scmp.le.s32.totalorder 2, %s17
      // Predicated region
      $region49: #{tpu_custom_call.1} parent=5 // pred_check
        %p296 = pneg %p295
      $region50: #{tpu_custom_call.1} parent=5 // pred_check_branch
        %298 = sbr.rel (%p296) target = $region52
      $region51: #{tpu_custom_call.1} parent=5 // pred_region
        %s299 = ssub.s32 %s17, 2
        // Predicated region
        $region53: #{tpu_custom_call.1} parent=51 // pred_check
          %p300 = pneg %p135
        $region54: #{tpu_custom_call.1} parent=51 // pred_check_branch
          %302 = sbr.rel (%p300) target = $region56
        $region55: #{tpu_custom_call.1} parent=51 // pred_region
          %s303 = sand.u32 %s120, 1
          %s304 = scalar_lea.sflag [#allocation4], %s303
          %s305 = sand.u32 %s120, 1
          %s306 = smul.addr %s305, 4
          %s307 = scalar_lea.vmem [#allocation7], %s306
          %309 = dma.done %s304, 64
        $region56: #{tpu_custom_call.1} parent=51 // pred_fallthru
          _
      $region52: #{tpu_custom_call.1} parent=5 // pred_fallthru
        _
    $region6: #{tpu_custom_call.1} parent=1 // loop_footer
      %s21 = sadd.s32 1, %s17
    $region7: #{tpu_custom_call.1} parent=1 // loop_footer_branch
      %16 = sbr.rel target = $region3
    $region8: #{tpu_custom_call.1} parent=1 // loop_exit
      _
    %310 = vsyncpa [#allocation3], 1
    %s311 = scalar_lea.sflag [#allocation3], 1
    %312 = vsyncpa %s311, 1
    %313 = vsyncpa [#allocation6], 1
    %314 = vsyncpa [#allocation4], 1
    %s315 = scalar_lea.sflag [#allocation4], 1
    %316 = vsyncpa %s315, 1

</llo_original>
